<compile_context>
chip_gen: v7x
topology: tpu7x:2x2x1
jax: 0.10.0
libtpu: 0.0.40
codegen_flags: <defaults>
</compile_context>

<pallas_src>
import jax
import jax.numpy as jnp
import numpy as np
from jax.experimental import pallas as pl
from jax.experimental.pallas import tpu as pltpu


def _decoder_kernel(x_ref, w_ref, b_ref, o_ref):
    # x_ref: (1, N, C, HW)      VMEM  -- one step, full pixel extent (lanes = HW)
    # w_ref: (num_step, 3*C)    SMEM  -- all step weights, flattened o-major
    # b_ref: (num_step, 3)      SMEM  -- all step biases
    # o_ref: (1, N, 3, HW)      VMEM
    s = pl.program_id(0)
    C = x_ref.shape[2]
    n_out = o_ref.shape[2]

    # Hoist the per-channel loads; everything below is pure VPU work.
    xs = [x_ref[0, :, c, :].astype(jnp.float32) for c in range(C)]  # C x (N, HW)

    for o in range(n_out):                       # unrolled: 3 outputs
        acc = w_ref[s, o * C + 0] * xs[0]        # scalar-broadcast multiply
        for c in range(1, C):                    # unrolled: C-1 FMAs
            acc = acc + w_ref[s, o * C + c] * xs[c]
        acc = acc + b_ref[s, o]
        o_ref[0, :, o, :] = acc.astype(o_ref.dtype)


def decoder_forward(x, weights, biases):
    """x: (num_step, N, C, H, W); weights: (num_step, 3, C); biases: (num_step, 3).

    Returns a stacked (num_step, N, 3, H, W) array; out[i] equals the i-th element of
    the PyTorch Decoder.forward output list.
    """
    num_step, N, C, H, W = x.shape
    HW = H * W

    # Free reshapes -- no data movement, no transposes.
    x_r = x.reshape(num_step, N, C, HW)
    w_flat = weights.reshape(num_step, 3 * C)

    # TODO(synk): for much larger H*W, add a lane tile over HW (multiples of 128,
    # budgeted against 64 MiB VMEM on v7x); at these sizes one block per step is best.
    out = pl.pallas_call(
        _decoder_kernel,
        out_shape=jax.ShapeDtypeStruct((num_step, N, 3, HW), x.dtype),
        grid=(num_step,),
        in_specs=[
            pl.BlockSpec((1, N, C, HW), lambda s: (s, 0, 0, 0)),
            pl.BlockSpec(memory_space=pltpu.MemorySpace.SMEM),   # all weights, loaded once
            pl.BlockSpec(memory_space=pltpu.MemorySpace.SMEM),   # all biases, loaded once
        ],
        out_specs=pl.BlockSpec((1, N, 3, HW), lambda s: (s, 0, 0, 0)),
        compiler_params=pltpu.CompilerParams(
            dimension_semantics=("parallel",),    # steps are independent (v7x 2-TC sharding)
        ),
    )(x_r, w_flat, biases)

    return out.reshape(num_step, N, 3, H, W)


def _reference(x, weights, biases):
    # Pure-JAX reference of the per-step 1x1 convs, stacked.
    return jnp.einsum("snchw,soc->snohw", x, weights) + biases[:, None, :, None, None]


if __name__ == "__main__":
    num_step = 8
    num_channel = 4
    N, H, W = 2, 16, 16

    key = jax.random.PRNGKey(0)
    kx, kw, kb = jax.random.split(key, 3)

    x = jax.random.normal(kx, (num_step, N, num_channel, H, W), dtype=jnp.float32)
    # Deterministic parameter init matching Conv2d(num_channel, 3, kernel_size=1).
    fan_in = num_channel  # 1x1 kernel
    bound = 1.0 / np.sqrt(fan_in)
    weights = jax.random.uniform(kw, (num_step, 3, num_channel),
                                 minval=-bound, maxval=bound, dtype=jnp.float32)
    biases = jax.random.uniform(kb, (num_step, 3),
                                minval=-bound, maxval=bound, dtype=jnp.float32)

    fwd = jax.jit(decoder_forward)
    out = jax.block_until_ready(fwd(x, weights, biases))

    ref = _reference(x, weights, biases)
    assert out.shape == (num_step, N, 3, H, W)
    for i in range(num_step):  # per-step check == PyTorch module's output list
        np.testing.assert_allclose(np.asarray(out[i]), np.asarray(ref[i]),
                                    rtol=1e-5, atol=1e-5)

    print("KERNEL_OK")
</pallas_src>

<mosaic_0001>
module attributes {stable_mosaic.version = 11 : i64} {
  func.func @_decoder_kernel(%arg0: i32, %arg1: memref<1x2x4x256xf32, #tpu.memory_space<vmem>>, %arg2: memref<8x12xf32, #tpu.memory_space<smem>>, %arg3: memref<8x3xf32, #tpu.memory_space<smem>>, %arg4: memref<1x2x3x256xf32, #tpu.memory_space<vmem>>) attributes {dimension_semantics = [#tpu.dimension_semantics<parallel>], iteration_bounds = array<i64: 8>, scalar_prefetch = 0 : i64, scratch_operands = 0 : i64, tpu.core_type = #tpu.core_type<tc>, window_params = [{transform_indices = @transform_0, window_bounds = array<i64: 1, 2, 4, 256>}, {transform_indices = @transform_1, window_bounds = array<i64: 8, 12>}, {transform_indices = @transform_2, window_bounds = array<i64: 8, 3>}, {transform_indices = @transform_3, window_bounds = array<i64: 1, 2, 3, 256>}]} {
    %c0 = arith.constant 0 : index
    %c0_0 = arith.constant 0 : index
    %c0_1 = arith.constant 0 : index
    %c0_2 = arith.constant 0 : index
    %0 = vector.load %arg1[%c0, %c0_0, %c0_1, %c0_2] : memref<1x2x4x256xf32, #tpu.memory_space<vmem>>, vector<1x2x1x256xf32>
    %1 = vector.shape_cast %0 : vector<1x2x1x256xf32> to vector<2x256xf32>
    %c0_3 = arith.constant 0 : index
    %c0_4 = arith.constant 0 : index
    %c1 = arith.constant 1 : index
    %c0_5 = arith.constant 0 : index
    %2 = vector.load %arg1[%c0_3, %c0_4, %c1, %c0_5] : memref<1x2x4x256xf32, #tpu.memory_space<vmem>>, vector<1x2x1x256xf32>
    %3 = vector.shape_cast %2 : vector<1x2x1x256xf32> to vector<2x256xf32>
    %c0_6 = arith.constant 0 : index
    %c0_7 = arith.constant 0 : index
    %c2 = arith.constant 2 : index
    %c0_8 = arith.constant 0 : index
    %4 = vector.load %arg1[%c0_6, %c0_7, %c2, %c0_8] : memref<1x2x4x256xf32, #tpu.memory_space<vmem>>, vector<1x2x1x256xf32>
    %5 = vector.shape_cast %4 : vector<1x2x1x256xf32> to vector<2x256xf32>
    %c0_9 = arith.constant 0 : index
    %c0_10 = arith.constant 0 : index
    %c3 = arith.constant 3 : index
    %c0_11 = arith.constant 0 : index
    %6 = vector.load %arg1[%c0_9, %c0_10, %c3, %c0_11] : memref<1x2x4x256xf32, #tpu.memory_space<vmem>>, vector<1x2x1x256xf32>
    %7 = vector.shape_cast %6 : vector<1x2x1x256xf32> to vector<2x256xf32>
    %8 = arith.index_cast %arg0 : i32 to index
    %c0_12 = arith.constant 0 : index
    %9 = memref.load %arg2[%8, %c0_12] : memref<8x12xf32, #tpu.memory_space<smem>>
    %10 = vector.broadcast %9 : f32 to vector<2x256xf32>
    %11 = arith.mulf %10, %1 : vector<2x256xf32>
    %12 = arith.index_cast %arg0 : i32 to index
    %c1_13 = arith.constant 1 : index
    %13 = memref.load %arg2[%12, %c1_13] : memref<8x12xf32, #tpu.memory_space<smem>>
    %14 = vector.broadcast %13 : f32 to vector<2x256xf32>
    %15 = arith.mulf %14, %3 : vector<2x256xf32>
    %16 = arith.addf %11, %15 : vector<2x256xf32>
    %17 = arith.index_cast %arg0 : i32 to index
    %c2_14 = arith.constant 2 : index
    %18 = memref.load %arg2[%17, %c2_14] : memref<8x12xf32, #tpu.memory_space<smem>>
    %19 = vector.broadcast %18 : f32 to vector<2x256xf32>
    %20 = arith.mulf %19, %5 : vector<2x256xf32>
    %21 = arith.addf %16, %20 : vector<2x256xf32>
    %22 = arith.index_cast %arg0 : i32 to index
    %c3_15 = arith.constant 3 : index
    %23 = memref.load %arg2[%22, %c3_15] : memref<8x12xf32, #tpu.memory_space<smem>>
    %24 = vector.broadcast %23 : f32 to vector<2x256xf32>
    %25 = arith.mulf %24, %7 : vector<2x256xf32>
    %26 = arith.addf %21, %25 : vector<2x256xf32>
    %27 = arith.index_cast %arg0 : i32 to index
    %c0_16 = arith.constant 0 : index
    %28 = memref.load %arg3[%27, %c0_16] : memref<8x3xf32, #tpu.memory_space<smem>>
    %29 = vector.broadcast %28 : f32 to vector<2x256xf32>
    %30 = arith.addf %26, %29 : vector<2x256xf32>
    %c0_17 = arith.constant 0 : index
    %c0_18 = arith.constant 0 : index
    %c0_19 = arith.constant 0 : index
    %c0_20 = arith.constant 0 : index
    %31 = vector.load %arg4[%c0_17, %c0_18, %c0_19, %c0_20] : memref<1x2x3x256xf32, #tpu.memory_space<vmem>>, vector<1x2x1x256xf32>
    %32 = vector.shape_cast %31 : vector<1x2x1x256xf32> to vector<2x256xf32>
    %33 = vector.shape_cast %30 : vector<2x256xf32> to vector<1x2x1x256xf32>
    tpu.vector_store %arg4[%c0_17, %c0_18, %c0_19, %c0_20], %33 {strides = array<i32>} : memref<1x2x3x256xf32, #tpu.memory_space<vmem>>, vector<1x2x1x256xf32>,
    %34 = arith.index_cast %arg0 : i32 to index
    %c4 = arith.constant 4 : index
    %35 = memref.load %arg2[%34, %c4] : memref<8x12xf32, #tpu.memory_space<smem>>
    %36 = vector.broadcast %35 : f32 to vector<2x256xf32>
    %37 = arith.mulf %36, %1 : vector<2x256xf32>
    %38 = arith.index_cast %arg0 : i32 to index
    %c5 = arith.constant 5 : index
    %39 = memref.load %arg2[%38, %c5] : memref<8x12xf32, #tpu.memory_space<smem>>
    %40 = vector.broadcast %39 : f32 to vector<2x256xf32>
    %41 = arith.mulf %40, %3 : vector<2x256xf32>
    %42 = arith.addf %37, %41 : vector<2x256xf32>
    %43 = arith.index_cast %arg0 : i32 to index
    %c6 = arith.constant 6 : index
    %44 = memref.load %arg2[%43, %c6] : memref<8x12xf32, #tpu.memory_space<smem>>
    %45 = vector.broadcast %44 : f32 to vector<2x256xf32>
    %46 = arith.mulf %45, %5 : vector<2x256xf32>
    %47 = arith.addf %42, %46 : vector<2x256xf32>
    %48 = arith.index_cast %arg0 : i32 to index
    %c7 = arith.constant 7 : index
    %49 = memref.load %arg2[%48, %c7] : memref<8x12xf32, #tpu.memory_space<smem>>
    %50 = vector.broadcast %49 : f32 to vector<2x256xf32>
    %51 = arith.mulf %50, %7 : vector<2x256xf32>
    %52 = arith.addf %47, %51 : vector<2x256xf32>
    %53 = arith.index_cast %arg0 : i32 to index
    %c1_21 = arith.constant 1 : index
    %54 = memref.load %arg3[%53, %c1_21] : memref<8x3xf32, #tpu.memory_space<smem>>
    %55 = vector.broadcast %54 : f32 to vector<2x256xf32>
    %56 = arith.addf %52, %55 : vector<2x256xf32>
    %c0_22 = arith.constant 0 : index
    %c0_23 = arith.constant 0 : index
    %c1_24 = arith.constant 1 : index
    %c0_25 = arith.constant 0 : index
    %57 = vector.load %arg4[%c0_22, %c0_23, %c1_24, %c0_25] : memref<1x2x3x256xf32, #tpu.memory_space<vmem>>, vector<1x2x1x256xf32>
    %58 = vector.shape_cast %57 : vector<1x2x1x256xf32> to vector<2x256xf32>
    %59 = vector.shape_cast %56 : vector<2x256xf32> to vector<1x2x1x256xf32>
    tpu.vector_store %arg4[%c0_22, %c0_23, %c1_24, %c0_25], %59 {strides = array<i32>} : memref<1x2x3x256xf32, #tpu.memory_space<vmem>>, vector<1x2x1x256xf32>,
    %60 = arith.index_cast %arg0 : i32 to index
    %c8 = arith.constant 8 : index
    %61 = memref.load %arg2[%60, %c8] : memref<8x12xf32, #tpu.memory_space<smem>>
    %62 = vector.broadcast %61 : f32 to vector<2x256xf32>
    %63 = arith.mulf %62, %1 : vector<2x256xf32>
    %64 = arith.index_cast %arg0 : i32 to index
    %c9 = arith.constant 9 : index
    %65 = memref.load %arg2[%64, %c9] : memref<8x12xf32, #tpu.memory_space<smem>>
    %66 = vector.broadcast %65 : f32 to vector<2x256xf32>
    %67 = arith.mulf %66, %3 : vector<2x256xf32>
    %68 = arith.addf %63, %67 : vector<2x256xf32>
    %69 = arith.index_cast %arg0 : i32 to index
    %c10 = arith.constant 10 : index
    %70 = memref.load %arg2[%69, %c10] : memref<8x12xf32, #tpu.memory_space<smem>>
    %71 = vector.broadcast %70 : f32 to vector<2x256xf32>
    %72 = arith.mulf %71, %5 : vector<2x256xf32>
    %73 = arith.addf %68, %72 : vector<2x256xf32>
    %74 = arith.index_cast %arg0 : i32 to index
    %c11 = arith.constant 11 : index
    %75 = memref.load %arg2[%74, %c11] : memref<8x12xf32, #tpu.memory_space<smem>>
    %76 = vector.broadcast %75 : f32 to vector<2x256xf32>
    %77 = arith.mulf %76, %7 : vector<2x256xf32>
    %78 = arith.addf %73, %77 : vector<2x256xf32>
    %79 = arith.index_cast %arg0 : i32 to index
    %c2_26 = arith.constant 2 : index
    %80 = memref.load %arg3[%79, %c2_26] : memref<8x3xf32, #tpu.memory_space<smem>>
    %81 = vector.broadcast %80 : f32 to vector<2x256xf32>
    %82 = arith.addf %78, %81 : vector<2x256xf32>
    %c0_27 = arith.constant 0 : index
    %c0_28 = arith.constant 0 : index
    %c2_29 = arith.constant 2 : index
    %c0_30 = arith.constant 0 : index
    %83 = vector.load %arg4[%c0_27, %c0_28, %c2_29, %c0_30] : memref<1x2x3x256xf32, #tpu.memory_space<vmem>>, vector<1x2x1x256xf32>
    %84 = vector.shape_cast %83 : vector<1x2x1x256xf32> to vector<2x256xf32>
    %85 = vector.shape_cast %82 : vector<2x256xf32> to vector<1x2x1x256xf32>
    tpu.vector_store %arg4[%c0_27, %c0_28, %c2_29, %c0_30], %85 {strides = array<i32>} : memref<1x2x3x256xf32, #tpu.memory_space<vmem>>, vector<1x2x1x256xf32>,
    return
  }
  func.func @transform_0(%arg0: i32) -> (i32, i32, i32, i32) {
    %c0_i32 = arith.constant 0 : i32
    %c0_i32_0 = arith.constant 0 : i32
    %c0_i32_1 = arith.constant 0 : i32
    %c0_i32_2 = arith.constant 0 : i32
    return %arg0, %c0_i32, %c0_i32_0, %c0_i32_1 : i32, i32, i32, i32
  }
  func.func @transform_1(%arg0: i32) -> (i32, i32) {
    %c0_i32 = arith.constant 0 : i32
    %c0_i32_0 = arith.constant 0 : i32
    %c0_i32_1 = arith.constant 0 : i32
    return %c0_i32, %c0_i32_0 : i32, i32
  }
  func.func @transform_2(%arg0: i32) -> (i32, i32) {
    %c0_i32 = arith.constant 0 : i32
    %c0_i32_0 = arith.constant 0 : i32
    %c0_i32_1 = arith.constant 0 : i32
    return %c0_i32, %c0_i32_0 : i32, i32
  }
  func.func @transform_3(%arg0: i32) -> (i32, i32, i32, i32) {
    %c0_i32 = arith.constant 0 : i32
    %c0_i32_0 = arith.constant 0 : i32
    %c0_i32_1 = arith.constant 0 : i32
    %c0_i32_2 = arith.constant 0 : i32
    return %arg0, %c0_i32, %c0_i32_0, %c0_i32_1 : i32, i32, i32, i32
  }
}

</mosaic_0001>

<llo_original>
// kernel: decoder_forward.1
$region0: #{decoder_forward.1}
  #allocation0 [shape = 'u32[]', space=smem, size = 0x4, offset = 0x4, fixed_abs, tag = 'smem constant byte address 0x4 - core index']
  #allocation1 [shape = 'u32[144,128]{1,0:T(1,128)}', space=vmem, size = 0x12000, scoped, tag = 'internal scratch']
  %s0 = inlined_call_operand.vmem [shape: f32[8,2,4,256], index: 0, kind: input, shape index: {}]
  %s1 = inlined_call_operand.vmem [shape: f32[8,12], index: 1, kind: input, shape index: {}]
  %s2 = inlined_call_operand.vmem [shape: f32[8,3], index: 2, kind: input, shape index: {}]
  %s3 = inlined_call_operand.vmem [shape: f32[8,2,3,256], index: 3, kind: output, shape index: {}]
  %s4 = sld [smem:[#allocation0]]
  $region53: #{decoder_forward.1} parent=0
    _
  %s6 = ssub.s32 1, %s4
  %s7 = scalar_select 0, %s6, %s4
  $region1: #{decoder_forward.1} parent=0
    #allocation2 [shape = 'u8[4096]{0}', space=smem, size = 0x1000, scoped, tag = 'input window, operand 1, single buffered']
    #allocation3 [shape = 's32[2]{0}', space=sflag, size = 0x8, scoped, tag = 'scoped memory for decoder_forward.1']
    #allocation4 [shape = 'u8[4096]{0}', space=smem, size = 0x1000, scoped, tag = 'input window, operand 2, single buffered']
    #allocation5 [shape = 's32[1]{0}', space=sflag, size = 0x4, scoped, tag = 'scoped memory for decoder_forward.1']
    %8 = vsyncpa [#allocation3], 0
    %9 = vsyncpa [#allocation5], 0
    loop: start=0, step=1, limit=10
    $region2: #{decoder_forward.1} parent=1 // loop_pre_header
      _
    $region3: #{decoder_forward.1} parent=1 // loop_header
      %s11 = sphi 0, %s15
      %p12 = scmp.ge.s32.totalorder %s11, 10
      %s21 = sphi 0, %s23
      %s24 = sphi 0, %s21
      %s25 = sphi 0, %s24
      %s41 = sphi 0, %s25
      %s45 = sphi 0, %s45
      %s47 = sphi 0, %s45
      %s48 = sphi 0, %s47
      %s62 = sphi 0, %s48
      %s66 = sphi 0, %s66
      %s68 = sphi 0, %s66
      %s69 = sphi 0, %s68
      %s83 = sphi 0, %s69
      %s89 = sphi 0, %s91
      %s92 = sphi 0, %s89
      %s93 = sphi 0, %s92
      %s109 = sphi 0, %s93
    $region4: #{decoder_forward.1} parent=1 // loop_header_branch
      %14 = sbr.rel (%p12) target = $region8
    $region5: #{decoder_forward.1} parent=1 // loop_body
      %s16 = ssub.s32 %s11, 1
      %s17 = ssub.s32 %s11, 2
      %s18 = sadd.s32 %s11, 1
      %s19 = ssub.s32 %s11, %s18
      %p20 = scmp.eq.s32.totalorder %s19, 0
      %s22 = sadd.s32 %s21, 1
      %s23 = scalar_select %p20, %s21, %s22
      %p26 = pneg %p20
      %p27 = scmp.eq.s32.totalorder %s11, 7
      %p28 = por %p26, %p27
      %p29 = scmp.ne.s32.totalorder %s21, %s24
      %p30 = scmp.eq.s32.totalorder %s11, 0
      %p31 = por %p29, %p30
      %p32 = scmp.ne.s32.totalorder %s21, %s24
      %p33 = scmp.eq.s32.totalorder %s16, 7
      %p34 = por %p32, %p33
      %p35 = scmp.ne.s32.totalorder %s24, %s25
      %p36 = scmp.eq.s32.totalorder %s16, 0
      %p37 = por %p35, %p36
      %p38 = scmp.ne.s32.totalorder %s24, %s25
      %p39 = scmp.eq.s32.totalorder %s17, 7
      %p40 = por %p38, %p39
      %p42 = scmp.ne.s32.totalorder %s25, %s41
      %p43 = scmp.eq.s32.totalorder %s17, 0
      %p44 = por %p42, %p43
      %s46 = sadd.s32 %s45, 1
      %p49 = scmp.eq.s32.totalorder %s11, 7
      %p50 = scmp.ne.s32.totalorder %s45, %s47
      %p51 = scmp.eq.s32.totalorder %s11, 0
      %p52 = por %p50, %p51
      %p53 = scmp.ne.s32.totalorder %s45, %s47
      %p54 = scmp.eq.s32.totalorder %s16, 7
      %p55 = por %p53, %p54
      %p56 = scmp.ne.s32.totalorder %s47, %s48
      %p57 = scmp.eq.s32.totalorder %s16, 0
      %p58 = por %p56, %p57
      %p59 = scmp.ne.s32.totalorder %s47, %s48
      %p60 = scmp.eq.s32.totalorder %s17, 7
      %p61 = por %p59, %p60
      %p63 = scmp.ne.s32.totalorder %s48, %s62
      %p64 = scmp.eq.s32.totalorder %s17, 0
      %p65 = por %p63, %p64
      %s67 = sadd.s32 %s66, 1
      %p70 = scmp.eq.s32.totalorder %s11, 7
      %p71 = scmp.ne.s32.totalorder %s66, %s68
      %p72 = scmp.eq.s32.totalorder %s11, 0
      %p73 = por %p71, %p72
      %p74 = scmp.ne.s32.totalorder %s66, %s68
      %p75 = scmp.eq.s32.totalorder %s16, 7
      %p76 = por %p74, %p75
      %p77 = scmp.ne.s32.totalorder %s68, %s69
      %p78 = scmp.eq.s32.totalorder %s16, 0
      %p79 = por %p77, %p78
      %p80 = scmp.ne.s32.totalorder %s68, %s69
      %p81 = scmp.eq.s32.totalorder %s17, 7
      %p82 = por %p80, %p81
      %p84 = scmp.ne.s32.totalorder %s69, %s83
      %p85 = scmp.eq.s32.totalorder %s17, 0
      %p86 = por %p84, %p85
      %s87 = ssub.s32 %s11, %s18
      %p88 = scmp.eq.s32.totalorder %s87, 0
      %s90 = sadd.s32 %s89, 1
      %s91 = scalar_select %p88, %s89, %s90
      %p94 = pneg %p88
      %p95 = scmp.eq.s32.totalorder %s11, 7
      %p96 = por %p94, %p95
      %p97 = scmp.ne.s32.totalorder %s89, %s92
      %p98 = scmp.eq.s32.totalorder %s11, 0
      %p99 = por %p97, %p98
      %p100 = scmp.ne.s32.totalorder %s89, %s92
      %p101 = scmp.eq.s32.totalorder %s16, 7
      %p102 = por %p100, %p101
      %p103 = scmp.ne.s32.totalorder %s92, %s93
      %p104 = scmp.eq.s32.totalorder %s16, 0
      %p105 = por %p103, %p104
      %p106 = scmp.ne.s32.totalorder %s92, %s93
      %p107 = scmp.eq.s32.totalorder %s17, 7
      %p108 = por %p106, %p107
      %p110 = scmp.ne.s32.totalorder %s93, %s109
      %p111 = scmp.eq.s32.totalorder %s17, 0
      %p112 = por %p110, %p111
      %p113 = scmp.le.s32.totalorder 1, %s11
      %p114 = scmp.lt.s32.totalorder %s11, 9
      %p115 = pnand %p113, %p114
      %p116 = pneg %p115
      // Predicated region
      $region9: #{decoder_forward.1} parent=5 // pred_check
        _
      $region10: #{decoder_forward.1} parent=5 // pred_check_branch
        %118 = sbr.rel (%p115) target = $region12
      $region11: #{decoder_forward.1} parent=5 // pred_region
        %s119 = ssub.s32 %s11, 1
        // Predicated region
        $region13: #{decoder_forward.1} parent=11 // pred_check
          %p120 = pneg %p58
        $region14: #{decoder_forward.1} parent=11 // pred_check_branch
          %122 = sbr.rel (%p120) target = $region16
        $region15: #{decoder_forward.1} parent=11 // pred_region
          %s124 = ssub.s32 128, 128
          %125 = vsyncadd [#allocation3], %s124
          %s127 = sshll.u32 %s1, 4
          %s128 = int_to_ptr.vmem [resolvable:$true] %s127
          %130 = dma.vmem_to_smem %s128, 128, [#allocation2], [#allocation3]
        $region16: #{decoder_forward.1} parent=11 // pred_fallthru
          _
        // Predicated region
        $region17: #{decoder_forward.1} parent=11 // pred_check
          %p131 = pneg %p79
        $region18: #{decoder_forward.1} parent=11 // pred_check_branch
          %133 = sbr.rel (%p131) target = $region20
        $region19: #{decoder_forward.1} parent=11 // pred_region
          %s135 = ssub.s32 128, 128
          %136 = vsyncadd [#allocation5], %s135
          %s138 = sshll.u32 %s2, 4
          %s139 = int_to_ptr.vmem [resolvable:$true] %s138
          %141 = dma.vmem_to_smem %s139, 128, [#allocation4], [#allocation5]
        $region20: #{decoder_forward.1} parent=11 // pred_fallthru
          _
      $region12: #{decoder_forward.1} parent=5 // pred_fallthru
        _
      %p142 = scmp.lt.s32.totalorder %s11, 8
      // Predicated region
      $region21: #{decoder_forward.1} parent=5 // pred_check
        %p143 = pneg %p142
      $region22: #{decoder_forward.1} parent=5 // pred_check_branch
        %145 = sbr.rel (%p143) target = $region24
      $region23: #{decoder_forward.1} parent=5 // pred_region
        // Predicated region
        $region25: #{decoder_forward.1} parent=23 // pred_check
          %p146 = pneg %p31
        $region26: #{decoder_forward.1} parent=23 // pred_check_branch
          %148 = sbr.rel (%p146) target = $region28
        $region27: #{decoder_forward.1} parent=23 // pred_region
          %p149 = scmp.lt.s32.totalorder %s11, 7
          %s150 = scalar_select %p149, %s11, 7
          %s151 = smul.addr %s150, 4
          %s152 = smul.addr %s151, 4
          %s153 = scalar_lea.vmem %s0, %s152
        $region28: #{decoder_forward.1} parent=23 // pred_fallthru
          _
      $region24: #{decoder_forward.1} parent=5 // pred_fallthru
        _
      %p154 = scmp.le.s32.totalorder 1, %s11
      %p155 = scmp.lt.s32.totalorder %s11, 9
      %p156 = pnand %p154, %p155
      %p157 = pneg %p156
      // Predicated region
      $region29: #{decoder_forward.1} parent=5 // pred_check
        _
      $region30: #{decoder_forward.1} parent=5 // pred_check_branch
        %159 = sbr.rel (%p156) target = $region32
      $region31: #{decoder_forward.1} parent=5 // pred_region
        %s160 = ssub.s32 %s11, 1
        // Predicated region
        $region33: #{decoder_forward.1} parent=31 // pred_check
          %p161 = pneg %p58
        $region34: #{decoder_forward.1} parent=31 // pred_check_branch
          %163 = sbr.rel (%p161) target = $region36
        $region35: #{decoder_forward.1} parent=31 // pred_region
          %164 = dma.done [#allocation3], 128
        $region36: #{decoder_forward.1} parent=31 // pred_fallthru
          _
        // Predicated region
        $region37: #{decoder_forward.1} parent=31 // pred_check
          %p165 = pneg %p79
        $region38: #{decoder_forward.1} parent=31 // pred_check_branch
          %167 = sbr.rel (%p165) target = $region40
        $region39: #{decoder_forward.1} parent=31 // pred_region
          %168 = dma.done [#allocation5], 128
        $region40: #{decoder_forward.1} parent=31 // pred_fallthru
          _
        %169 = sfence
        %p170 = scmp.lt.s32.totalorder %s16, 7
        %s171 = scalar_select %p170, %s16, 7
        %s172 = smul.addr %s171, 4
        %s173 = smul.addr %s172, 4
        %s174 = scalar_lea.vmem %s0, %s173
        %p175 = pneg %p37
        %p176 = pneg %p34
        %p177 = pneg %p58
        %p178 = pneg %p55
        %p179 = pneg %p79
        %p180 = pneg %p76
        %p181 = pneg %p105
        %p182 = pneg %p102
        %p183 = scmp.lt.s32.totalorder %s16, 7
        %s184 = scalar_select %p183, %s16, 7
        %s185 = smul.addr %s184, 4
        %s186 = smul.addr %s185, 4
        %s187 = scalar_lea.vmem %s3, %s186
        %p188 = scmp.lt.s32.totalorder %s16, 7
        %s189 = scalar_select %p188, %s16, 7
        %s190 = smul.addr %s189, 4
        %s191 = smul.addr %s190, 4
        %s192 = scalar_lea.vmem %s0, %s191
        %p193 = scmp.lt.s32.totalorder %s16, 7
        %s194 = scalar_select %p193, %s16, 7
        %s195 = smul.addr %s194, 4
        %s196 = smul.addr %s195, 4
        %s197 = scalar_lea.vmem %s3, %s196
        %v198 = vld [vmem:[%s192] ss:$4 sm:$0x3]
        %s199 = scalar_lea.vmem %s192, 8
        %v200 = vld [vmem:[%s199] ss:$4 sm:$0x3]
        %s201 = scalar_lea.vmem %s192, 1
        %v202 = vld [vmem:[%s201] ss:$4 sm:$0x3]
        %s203 = scalar_lea.vmem %s192, 9
        %v204 = vld [vmem:[%s203] ss:$4 sm:$0x3]
        %s205 = scalar_lea.vmem %s192, 2
        %v206 = vld [vmem:[%s205] ss:$4 sm:$0x3]
        %s207 = scalar_lea.vmem %s192, 10
        %v208 = vld [vmem:[%s207] ss:$4 sm:$0x3]
        %s209 = scalar_lea.vmem %s192, 3
        %v210 = vld [vmem:[%s209] ss:$4 sm:$0x3]
        %s211 = scalar_lea.vmem %s192, 11
        %v212 = vld [vmem:[%s211] ss:$4 sm:$0x3]
        %s213 = smul.u32 %s16, 128
        %s214 = sld [smem:[#allocation2 + %s213]]
        %v215 = vstv %s214
        %v216 = vmul.f32 %v215, %v198
        %v217 = vmul.f32 %v215, %v200
        %s218 = sadd.s32 %s213, 1
        %s219 = sld [smem:[#allocation2 + %s218]]
        %v220 = vstv %s219
        %v221 = vmul.f32 %v220, %v202
        %v222 = vmul.f32 %v220, %v204
        %v223 = vadd.f32 %v216, %v221
        %v224 = vadd.f32 %v217, %v222
        %s225 = sadd.s32 %s213, 2
        %s226 = sld [smem:[#allocation2 + %s225]]
        %v227 = vstv %s226
        %v228 = vmul.f32 %v227, %v206
        %v229 = vmul.f32 %v227, %v208
        %v230 = vadd.f32 %v223, %v228
        %v231 = vadd.f32 %v224, %v229
        %s232 = sadd.s32 %s213, 3
        %s233 = sld [smem:[#allocation2 + %s232]]
        %v234 = vstv %s233
        %v235 = vmul.f32 %v234, %v210
        %v236 = vmul.f32 %v234, %v212
        %v237 = vadd.f32 %v230, %v235
        %v238 = vadd.f32 %v231, %v236
        %s239 = sld [smem:[#allocation4 + %s213]]
        %v240 = vstv %s239
        %v241 = vadd.f32 %v237, %v240
        %v242 = vadd.f32 %v238, %v240
        %v243 = vlaneseq
        %vm244 = vcmp.ge.s32.totalorder %v243, 0
        %vm245 = vcmp.lt.s32.totalorder %v243, 256
        %vm246 = vmand %vm244, %vm245
        %247 = vst.msk [vmem:[%s197] ss:$4 sm:$0x3] %vm246, %v241
        %s248 = scalar_lea.vmem %s197, 8
        %249 = vst.msk [vmem:[%s248] ss:$4 sm:$0x3] %vm246, %v242
        %s250 = sadd.s32 %s213, 4
        %s251 = sld [smem:[#allocation2 + %s250]]
        %v252 = vstv %s251
        %v253 = vmul.f32 %v252, %v198
        %v254 = vmul.f32 %v252, %v200
        %s255 = sadd.s32 %s213, 5
        %s256 = sld [smem:[#allocation2 + %s255]]
        %v257 = vstv %s256
        %v258 = vmul.f32 %v257, %v202
        %v259 = vmul.f32 %v257, %v204
        %v260 = vadd.f32 %v253, %v258
        %v261 = vadd.f32 %v254, %v259
        %s262 = sadd.s32 %s213, 6
        %s263 = sld [smem:[#allocation2 + %s262]]
        %v264 = vstv %s263
        %v265 = vmul.f32 %v264, %v206
        %v266 = vmul.f32 %v264, %v208
        %v267 = vadd.f32 %v260, %v265
        %v268 = vadd.f32 %v261, %v266
        %s269 = sadd.s32 %s213, 7
        %s270 = sld [smem:[#allocation2 + %s269]]
        %v271 = vstv %s270
        %v272 = vmul.f32 %v271, %v210
        %v273 = vmul.f32 %v271, %v212
        %v274 = vadd.f32 %v267, %v272
        %v275 = vadd.f32 %v268, %v273
        %s276 = sld [smem:[#allocation4 + %s218]]
        %v277 = vstv %s276
        %v278 = vadd.f32 %v274, %v277
        %v279 = vadd.f32 %v275, %v277
        %s280 = scalar_lea.vmem %s197, 1
        %281 = vst.msk [vmem:[%s280] ss:$4 sm:$0x3] %vm246, %v278
        %s282 = scalar_lea.vmem %s197, 9
        %283 = vst.msk [vmem:[%s282] ss:$4 sm:$0x3] %vm246, %v279
        %s284 = sadd.s32 %s213, 8
        %s285 = sld [smem:[#allocation2 + %s284]]
        %v286 = vstv %s285
        %v287 = vmul.f32 %v286, %v198
        %v288 = vmul.f32 %v286, %v200
        %s289 = sadd.s32 %s213, 9
        %s290 = sld [smem:[#allocation2 + %s289]]
        %v291 = vstv %s290
        %v292 = vmul.f32 %v291, %v202
        %v293 = vmul.f32 %v291, %v204
        %v294 = vadd.f32 %v287, %v292
        %v295 = vadd.f32 %v288, %v293
        %s296 = sadd.s32 %s213, 10
        %s297 = sld [smem:[#allocation2 + %s296]]
        %v298 = vstv %s297
        %v299 = vmul.f32 %v298, %v206
        %v300 = vmul.f32 %v298, %v208
        %v301 = vadd.f32 %v294, %v299
        %v302 = vadd.f32 %v295, %v300
        %s303 = sadd.s32 %s213, 11
        %s304 = sld [smem:[#allocation2 + %s303]]
        %v305 = vstv %s304
        %v306 = vmul.f32 %v305, %v210
        %v307 = vmul.f32 %v305, %v212
        %v308 = vadd.f32 %v301, %v306
        %v309 = vadd.f32 %v302, %v307
        %s310 = sld [smem:[#allocation4 + %s225]]
        %v311 = vstv %s310
        %v312 = vadd.f32 %v308, %v311
        %v313 = vadd.f32 %v309, %v311
        %s314 = scalar_lea.vmem %s197, 2
        %315 = vst.msk [vmem:[%s314] ss:$4 sm:$0x3] %vm246, %v312
        %s316 = scalar_lea.vmem %s197, 10
        %317 = vst.msk [vmem:[%s316] ss:$4 sm:$0x3] %vm246, %v313
        %p318 = scmp.lt.s32.totalorder %s16, 7
        %s319 = scalar_select %p318, %s16, 7
        %s320 = smul.addr %s319, 4
        %s321 = smul.addr %s320, 4
        %s322 = scalar_lea.vmem %s3, %s321
        // Predicated region
        $region41: #{decoder_forward.1} parent=31 // pred_check
          %p323 = pneg %p102
        $region42: #{decoder_forward.1} parent=31 // pred_check_branch
          %325 = sbr.rel (%p323) target = $region44
        $region43: #{decoder_forward.1} parent=31 // pred_region
          _
        $region44: #{decoder_forward.1} parent=31 // pred_fallthru
          _
      $region32: #{decoder_forward.1} parent=5 // pred_fallthru
        _
      %p326 = scmp.le.s32.totalorder 2, %s11
      // Predicated region
      $region45: #{decoder_forward.1} parent=5 // pred_check
        %p327 = pneg %p326
      $region46: #{decoder_forward.1} parent=5 // pred_check_branch
        %329 = sbr.rel (%p327) target = $region48
      $region47: #{decoder_forward.1} parent=5 // pred_region
        %s330 = ssub.s32 %s11, 2
        // Predicated region
        $region49: #{decoder_forward.1} parent=47 // pred_check
          %p331 = pneg %p108
        $region50: #{decoder_forward.1} parent=47 // pred_check_branch
          %333 = sbr.rel (%p331) target = $region52
        $region51: #{decoder_forward.1} parent=47 // pred_region
          %p334 = scmp.lt.s32.totalorder %s17, 7
          %s335 = scalar_select %p334, %s17, 7
          %s336 = smul.addr %s335, 4
          %s337 = smul.addr %s336, 4
          %s338 = scalar_lea.vmem %s3, %s337
        $region52: #{decoder_forward.1} parent=47 // pred_fallthru
          _
      $region48: #{decoder_forward.1} parent=5 // pred_fallthru
        _
    $region6: #{decoder_forward.1} parent=1 // loop_footer
      %s15 = sadd.s32 1, %s11
    $region7: #{decoder_forward.1} parent=1 // loop_footer_branch
      %10 = sbr.rel target = $region3
    $region8: #{decoder_forward.1} parent=1 // loop_exit
      _
    %339 = vsyncpa [#allocation3], 1
    %s340 = scalar_lea.sflag [#allocation3], 1
    %341 = vsyncpa %s340, 1
    %342 = vsyncpa [#allocation5], 1

</llo_original>
